<compile_context>
chip_gen: v7x
topology: tpu7x:2x2x1
jax: 0.10.0
libtpu: 0.0.40
codegen_flags: <defaults>
</compile_context>

<pallas_src>
import math
import functools

import jax
import jax.numpy as jnp
from jax import lax
from jax.experimental import pallas as pl
from jax.experimental.pallas import tpu as pltpu


def _round_up(x, m):
    return ((x + m - 1) // m) * m


def _mha_kernel(x_ref, wqkv_ref, bqkv_ref, rep_ref, kvmask_ref, onesbd_ref,
                wo_ref, bout_ref, out_ref, w_ref,
                *, num_heads, embed_dim, seq_len, lane_off):
    E = embed_dim
    S = seq_len
    H = num_heads

    x = x_ref[...]                                                    # (S, E)

    # Fused Q|K|V projection (scale already folded into Wq/bq).  q/k/v each
    # start at a 128-lane tile boundary -> tile-aligned extraction below.
    qkv = jnp.dot(x, wqkv_ref[...], preferred_element_type=jnp.float32) + bqkv_ref[...]
    q = qkv[:, 0:E]                                                   # (S, E), scaled
    k = qkv[:, lane_off:lane_off + E]                                 # (S, E)
    v = qkv[:, 2 * lane_off:2 * lane_off + E]                         # (S, E)

    rep = rep_ref[...]          # (H*S, S)  0/1: row h*S+j selects key/value row j
    kv_mask = kvmask_ref[...]   # (H*S, E)  0/1: row h*S+j keeps head-h feature lanes

    # Head-major sublane replication of k/v on the MXU, masked per head.
    k_bd = jnp.dot(rep, k, preferred_element_type=jnp.float32) * kv_mask   # (H*S, E)
    v_bd = jnp.dot(rep, v, preferred_element_type=jnp.float32) * kv_mask   # (H*S, E)

    # All H score matrices in ONE matmul: s_all[i, h*S+j] = q_h[i] . k_h[j].
    # (Single transposed-RHS contraction, hoisted out of any loop.)
    s_all = lax.dot_general(q, k_bd, (((1,), (1,)), ((), ())),
                            preferred_element_type=jnp.float32)            # (S, H*S)

    # Softmax per head segment.  Subtracting the per-row max over ALL heads is
    # exact for every segment (constant per row) and avoids a segmented max.
    m = jnp.max(s_all, axis=-1, keepdims=True)
    p = jnp.exp(s_all - m)                                                  # one exp call

    # Per-segment sums broadcast to every lane of the segment via one
    # block-diagonal ones matmul on the MXU.
    denom = jnp.dot(p, onesbd_ref[...], preferred_element_type=jnp.float32) # (S, H*S)
    inv = pl.reciprocal(denom, approx=True)                                 # EUP
    inv = inv * (2.0 - denom * inv)                                         # Newton -> f32 accuracy
    p = p * inv                                                             # normalized per head

    # All per-head contexts in ONE matmul; heads land on their own feature
    # lanes because v_bd is head-masked.
    ctx = jnp.dot(p, v_bd, preferred_element_type=jnp.float32)              # (S, E)

    out = jnp.dot(ctx, wo_ref[...], preferred_element_type=jnp.float32) + bout_ref[...]
    w_avg = jnp.dot(p, rep, preferred_element_type=jnp.float32) * (1.0 / H) # (S, S)

    # Direct stores (no concatenate epilogue).
    out_ref[...] = out
    w_ref[...] = w_avg


def attention_layer_forward(x, params, *, num_heads):
    """x: (B, S, E) f32. params follow PyTorch MultiheadAttention layout."""
    B, S, E = x.shape
    H = num_heads
    Dh = E // H
    HS = H * S
    scale = 1.0 / math.sqrt(Dh)

    in_w = params["in_proj_weight"]      # (3E, E)
    in_b = params["in_proj_bias"]        # (3E,)
    out_w = params["out_proj_weight"]    # (E, E)
    out_b = params["out_proj_bias"]      # (E,)

    # PyTorch Linear computes x @ W^T + b; pre-transpose so the kernel does x @ W_t.
    wq_t = in_w[0 * E:1 * E].T * scale
    wk_t = in_w[1 * E:2 * E].T
    wv_t = in_w[2 * E:3 * E].T
    wo_t = out_w.T
    bq = in_b[:E] * scale
    bk = in_b[E:2 * E]
    bv = in_b[2 * E:]

    # Fused Q|K|V weight: each sub-matrix starts at its own 128-lane tile so the
    # in-kernel q/k/v extraction is a tile-aligned lane slice.
    Eo = _round_up(E, 128)
    wqkv = jnp.zeros((E, 3 * Eo), jnp.float32)
    wqkv = wqkv.at[:, 0:E].set(wq_t)
    wqkv = wqkv.at[:, Eo:Eo + E].set(wk_t)
    wqkv = wqkv.at[:, 2 * Eo:2 * Eo + E].set(wv_t)
    bqkv = jnp.zeros((1, 3 * Eo), jnp.float32)
    bqkv = bqkv.at[:, 0:E].set(bq[None, :])
    bqkv = bqkv.at[:, Eo:Eo + E].set(bk[None, :])
    bqkv = bqkv.at[:, 2 * Eo:2 * Eo + E].set(bv[None, :])

    # Constant 0/1 structure matrices (tiny; built once in the wrapper).
    row_head = jnp.arange(HS) // S                    # head index of sublane row h*S+j
    col_head = jnp.arange(E) // Dh                    # head index of feature lane
    kv_mask = (row_head[:, None] == col_head[None, :]).astype(jnp.float32)     # (HS, E)
    ones_bd = (row_head[:, None] == row_head[None, :]).astype(jnp.float32)     # (HS, HS)
    rep_mat = ((jnp.arange(HS)[:, None] % S) ==
               jnp.arange(S)[None, :]).astype(jnp.float32)                     # (HS, S)
    b_out = out_b.reshape(1, E)

    kernel = functools.partial(_mha_kernel, num_heads=H, embed_dim=E,
                               seq_len=S, lane_off=Eo)

    # TODO(synk): at production sizes (long S / large E) the whole-sequence blocks
    # below need re-tiling; for this module's small shapes one block per batch is best.
    attn_out, attn_w = pl.pallas_call(
        kernel,
        out_shape=(jax.ShapeDtypeStruct((B, S, E), jnp.float32),
                   jax.ShapeDtypeStruct((B, S, S), jnp.float32)),
        grid=(B,),
        in_specs=[
            pl.BlockSpec((None, S, E), lambda b: (b, 0, 0)),          # x (batch squeezed)
            pl.BlockSpec((E, 3 * Eo), lambda b: (0, 0)),              # fused Wqkv
            pl.BlockSpec((1, 3 * Eo), lambda b: (0, 0)),              # fused bqkv
            pl.BlockSpec((HS, S), lambda b: (0, 0)),                  # replication / head-avg matrix
            pl.BlockSpec((HS, E), lambda b: (0, 0)),                  # per-head feature mask
            pl.BlockSpec((HS, HS), lambda b: (0, 0)),                 # block-diagonal ones
            pl.BlockSpec((E, E), lambda b: (0, 0)),                   # Wo^T
            pl.BlockSpec((1, E), lambda b: (0, 0)),                   # output bias
        ],
        out_specs=(pl.BlockSpec((None, S, E), lambda b: (b, 0, 0)),
                   pl.BlockSpec((None, S, S), lambda b: (b, 0, 0))),
        compiler_params=pltpu.CompilerParams(
            dimension_semantics=("parallel",),                        # both TCs on v7x (B>=2)
            vmem_limit_bytes=32 * 1024 * 1024),
    )(x, wqkv, bqkv, rep_mat, kv_mask, ones_bd, wo_t, b_out)

    return attn_out, attn_w


def _reference_forward(x, params, *, num_heads):
    """Pure-JAX reference matching PyTorch MultiheadAttention forward."""
    B, S, E = x.shape
    Dh = E // num_heads
    in_w, in_b = params["in_proj_weight"], params["in_proj_bias"]
    q = x @ in_w[:E].T + in_b[:E]
    k = x @ in_w[E:2 * E].T + in_b[E:2 * E]
    v = x @ in_w[2 * E:].T + in_b[2 * E:]

    def split(t):  # (B,S,E) -> (B,H,S,Dh)
        return t.reshape(B, S, num_heads, Dh).transpose(0, 2, 1, 3)

    qh, kh, vh = split(q), split(k), split(v)
    s = jnp.einsum("bhqd,bhkd->bhqk", qh * (1.0 / math.sqrt(Dh)), kh)
    p = jax.nn.softmax(s, axis=-1)
    ctx = jnp.einsum("bhqk,bhkd->bhqd", p, vh).transpose(0, 2, 1, 3).reshape(B, S, E)
    out = ctx @ params["out_proj_weight"].T + params["out_proj_bias"]
    return out, p.mean(axis=1)


def init_params(key, hidden_dim):
    k1, k2, k3, k4 = jax.random.split(key, 4)
    E = hidden_dim
    lim_in = math.sqrt(6.0 / (E + E))
    return {
        "in_proj_weight": jax.random.uniform(k1, (3 * E, E), jnp.float32, -lim_in, lim_in),
        "in_proj_bias": jax.random.normal(k2, (3 * E,), jnp.float32) * 0.02,
        "out_proj_weight": jax.random.uniform(k3, (E, E), jnp.float32, -lim_in, lim_in),
        "out_proj_bias": jax.random.normal(k4, (E,), jnp.float32) * 0.02,
    }


if __name__ == "__main__":
    B, S, E, H = 2, 8, 32, 8   # hidden_dim=32, num_heads=8 -> head_dim=4

    key = jax.random.PRNGKey(0)
    kx, kp = jax.random.split(key)
    x = jax.random.normal(kx, (B, S, E), jnp.float32)
    params = init_params(kp, E)

    fwd = jax.jit(functools.partial(attention_layer_forward, num_heads=H))
    attn_out, attn_w = fwd(x, params)
    jax.block_until_ready((attn_out, attn_w))

    ref_out, ref_w = _reference_forward(x, params, num_heads=H)
    assert attn_out.shape == (B, S, E) and attn_w.shape == (B, S, S)
    assert jnp.allclose(attn_out, ref_out, atol=2e-4, rtol=2e-4)
    assert jnp.allclose(attn_w, ref_w, atol=2e-4, rtol=2e-4)

    print("KERNEL_OK")
</pallas_src>

<mosaic_0001>
module attributes {stable_mosaic.version = 11 : i64} {
  func.func @_mha_kernel(%arg0: i32, %arg1: memref<1x8x32xf32, #tpu.memory_space<vmem>>, %arg2: memref<32x384xf32, #tpu.memory_space<vmem>>, %arg3: memref<1x384xf32, #tpu.memory_space<vmem>>, %arg4: memref<64x8xf32, #tpu.memory_space<vmem>>, %arg5: memref<64x32xf32, #tpu.memory_space<vmem>>, %arg6: memref<64x64xf32, #tpu.memory_space<vmem>>, %arg7: memref<32x32xf32, #tpu.memory_space<vmem>>, %arg8: memref<1x32xf32, #tpu.memory_space<vmem>>, %arg9: memref<1x8x32xf32, #tpu.memory_space<vmem>>, %arg10: memref<1x8x8xf32, #tpu.memory_space<vmem>>) attributes {dimension_semantics = [#tpu.dimension_semantics<parallel>], iteration_bounds = array<i64: 2>, scalar_prefetch = 0 : i64, scratch_operands = 0 : i64, tpu.core_type = #tpu.core_type<tc>, window_params = [{transform_indices = @transform_0, window_bounds = array<i64: 1, 8, 32>}, {pipeline_mode = #tpu.pipeline_mode<synchronous>, transform_indices = @transform_1, window_bounds = array<i64: 32, 384>}, {pipeline_mode = #tpu.pipeline_mode<synchronous>, transform_indices = @transform_2, window_bounds = array<i64: 1, 384>}, {pipeline_mode = #tpu.pipeline_mode<synchronous>, transform_indices = @transform_3, window_bounds = array<i64: 64, 8>}, {pipeline_mode = #tpu.pipeline_mode<synchronous>, transform_indices = @transform_4, window_bounds = array<i64: 64, 32>}, {pipeline_mode = #tpu.pipeline_mode<synchronous>, transform_indices = @transform_5, window_bounds = array<i64: 64, 64>}, {pipeline_mode = #tpu.pipeline_mode<synchronous>, transform_indices = @transform_6, window_bounds = array<i64: 32, 32>}, {pipeline_mode = #tpu.pipeline_mode<synchronous>, transform_indices = @transform_7, window_bounds = array<i64: 1, 32>}, {transform_indices = @transform_8, window_bounds = array<i64: 1, 8, 32>}, {transform_indices = @transform_9, window_bounds = array<i64: 1, 8, 8>}]} {
    %c0 = arith.constant 0 : index
    %c0_0 = arith.constant 0 : index
    %c0_1 = arith.constant 0 : index
    %0 = vector.load %arg1[%c0, %c0_0, %c0_1] : memref<1x8x32xf32, #tpu.memory_space<vmem>>, vector<1x8x32xf32>
    %1 = vector.shape_cast %0 : vector<1x8x32xf32> to vector<8x32xf32>
    %c0_2 = arith.constant 0 : index
    %c0_3 = arith.constant 0 : index
    %2 = vector.load %arg2[%c0_2, %c0_3] : memref<32x384xf32, #tpu.memory_space<vmem>>, vector<32x384xf32>
    %cst = arith.constant dense<0.000000e+00> : vector<8x384xf32>
    %3 = tpu.matmul %1, %2, %cst {dimension_numbers = #tpu.dot_dimension_numbers<[1], [0], [0], [1], [0, 0, 1, 1], [], []>} : vector<8x32xf32>, vector<32x384xf32>, vector<8x384xf32> -> vector<8x384xf32>
    %c0_4 = arith.constant 0 : index
    %c0_5 = arith.constant 0 : index
    %4 = vector.load %arg3[%c0_4, %c0_5] : memref<1x384xf32, #tpu.memory_space<vmem>>, vector<1x384xf32>
    %5 = vector.broadcast %4 : vector<1x384xf32> to vector<8x384xf32>
    %6 = arith.addf %3, %5 : vector<8x384xf32>
    %7 = vector.extract_strided_slice %6 {offsets = [0, 0], sizes = [8, 32], strides = [1, 1]} : vector<8x384xf32> to vector<8x32xf32>
    %8 = vector.extract_strided_slice %6 {offsets = [0, 128], sizes = [8, 32], strides = [1, 1]} : vector<8x384xf32> to vector<8x32xf32>
    %9 = vector.extract_strided_slice %6 {offsets = [0, 256], sizes = [8, 32], strides = [1, 1]} : vector<8x384xf32> to vector<8x32xf32>
    %c0_6 = arith.constant 0 : index
    %c0_7 = arith.constant 0 : index
    %10 = vector.load %arg4[%c0_6, %c0_7] : memref<64x8xf32, #tpu.memory_space<vmem>>, vector<64x8xf32>
    %c0_8 = arith.constant 0 : index
    %c0_9 = arith.constant 0 : index
    %11 = vector.load %arg5[%c0_8, %c0_9] : memref<64x32xf32, #tpu.memory_space<vmem>>, vector<64x32xf32>
    %cst_10 = arith.constant dense<0.000000e+00> : vector<64x32xf32>
    %12 = tpu.matmul %10, %8, %cst_10 {dimension_numbers = #tpu.dot_dimension_numbers<[1], [0], [0], [1], [0, 0, 1, 1], [], []>} : vector<64x8xf32>, vector<8x32xf32>, vector<64x32xf32> -> vector<64x32xf32>
    %13 = arith.mulf %12, %11 : vector<64x32xf32>
    %cst_11 = arith.constant dense<0.000000e+00> : vector<64x32xf32>
    %14 = tpu.matmul %10, %9, %cst_11 {dimension_numbers = #tpu.dot_dimension_numbers<[1], [0], [0], [1], [0, 0, 1, 1], [], []>} : vector<64x8xf32>, vector<8x32xf32>, vector<64x32xf32> -> vector<64x32xf32>
    %15 = arith.mulf %14, %11 : vector<64x32xf32>
    %cst_12 = arith.constant dense<0.000000e+00> : vector<8x64xf32>
    %16 = tpu.matmul %7, %13, %cst_12 {dimension_numbers = #tpu.dot_dimension_numbers<[1], [1], [0], [0], [0, 0, 1, 0], [], []>} : vector<8x32xf32>, vector<64x32xf32>, vector<8x64xf32> -> vector<8x64xf32>
    %cst_13 = arith.constant dense<0xFF800000> : vector<8xf32>
    %17 = vector.multi_reduction <maximumf>, %16, %cst_13 [1] : vector<8x64xf32> to vector<8xf32>
    %18 = vector.shape_cast %17 : vector<8xf32> to vector<8x1xf32>
    %19 = vector.broadcast %18 : vector<8x1xf32> to vector<8x64xf32>
    %20 = arith.subf %16, %19 : vector<8x64xf32>
    %21 = math.exp %20 : vector<8x64xf32>
    %c0_14 = arith.constant 0 : index
    %c0_15 = arith.constant 0 : index
    %22 = vector.load %arg6[%c0_14, %c0_15] : memref<64x64xf32, #tpu.memory_space<vmem>>, vector<64x64xf32>
    %cst_16 = arith.constant dense<0.000000e+00> : vector<8x64xf32>
    %23 = tpu.matmul %21, %22, %cst_16 {dimension_numbers = #tpu.dot_dimension_numbers<[1], [0], [0], [1], [0, 0, 1, 1], [], []>} : vector<8x64xf32>, vector<64x64xf32>, vector<8x64xf32> -> vector<8x64xf32>
    %24 = tpu.reciprocal %23 {approx = true} : vector<8x64xf32> -> vector<8x64xf32>
    %25 = arith.mulf %23, %24 : vector<8x64xf32>
    %cst_17 = arith.constant 2.000000e+00 : f32
    %26 = vector.broadcast %cst_17 : f32 to vector<8x64xf32>
    %27 = arith.subf %26, %25 : vector<8x64xf32>
    %28 = arith.mulf %24, %27 : vector<8x64xf32>
    %29 = arith.mulf %21, %28 : vector<8x64xf32>
    %cst_18 = arith.constant dense<0.000000e+00> : vector<8x32xf32>
    %30 = tpu.matmul %29, %15, %cst_18 {dimension_numbers = #tpu.dot_dimension_numbers<[1], [0], [0], [1], [0, 0, 1, 1], [], []>} : vector<8x64xf32>, vector<64x32xf32>, vector<8x32xf32> -> vector<8x32xf32>
    %c0_19 = arith.constant 0 : index
    %c0_20 = arith.constant 0 : index
    %31 = vector.load %arg7[%c0_19, %c0_20] : memref<32x32xf32, #tpu.memory_space<vmem>>, vector<32x32xf32>
    %cst_21 = arith.constant dense<0.000000e+00> : vector<8x32xf32>
    %32 = tpu.matmul %30, %31, %cst_21 {dimension_numbers = #tpu.dot_dimension_numbers<[1], [0], [0], [1], [0, 0, 1, 1], [], []>} : vector<8x32xf32>, vector<32x32xf32>, vector<8x32xf32> -> vector<8x32xf32>
    %c0_22 = arith.constant 0 : index
    %c0_23 = arith.constant 0 : index
    %33 = vector.load %arg8[%c0_22, %c0_23] : memref<1x32xf32, #tpu.memory_space<vmem>>, vector<1x32xf32>
    %34 = vector.broadcast %33 : vector<1x32xf32> to vector<8x32xf32>
    %35 = arith.addf %32, %34 : vector<8x32xf32>
    %cst_24 = arith.constant dense<0.000000e+00> : vector<8x8xf32>
    %36 = tpu.matmul %29, %10, %cst_24 {dimension_numbers = #tpu.dot_dimension_numbers<[1], [0], [0], [1], [0, 0, 1, 1], [], []>} : vector<8x64xf32>, vector<64x8xf32>, vector<8x8xf32> -> vector<8x8xf32>
    %cst_25 = arith.constant 1.250000e-01 : f32
    %37 = vector.broadcast %cst_25 : f32 to vector<8x8xf32>
    %38 = arith.mulf %36, %37 : vector<8x8xf32>
    %c0_26 = arith.constant 0 : index
    %c0_27 = arith.constant 0 : index
    %c0_28 = arith.constant 0 : index
    %39 = vector.load %arg9[%c0_26, %c0_27, %c0_28] : memref<1x8x32xf32, #tpu.memory_space<vmem>>, vector<1x8x32xf32>
    %40 = vector.shape_cast %39 : vector<1x8x32xf32> to vector<8x32xf32>
    %41 = vector.shape_cast %35 : vector<8x32xf32> to vector<1x8x32xf32>
    tpu.vector_store %arg9[%c0_26, %c0_27, %c0_28], %41 {strides = array<i32>} : memref<1x8x32xf32, #tpu.memory_space<vmem>>, vector<1x8x32xf32>,
    %c0_29 = arith.constant 0 : index
    %c0_30 = arith.constant 0 : index
    %c0_31 = arith.constant 0 : index
    %42 = vector.load %arg10[%c0_29, %c0_30, %c0_31] : memref<1x8x8xf32, #tpu.memory_space<vmem>>, vector<1x8x8xf32>
    %43 = vector.shape_cast %42 : vector<1x8x8xf32> to vector<8x8xf32>
    %44 = vector.shape_cast %38 : vector<8x8xf32> to vector<1x8x8xf32>
    tpu.vector_store %arg10[%c0_29, %c0_30, %c0_31], %44 {strides = array<i32>} : memref<1x8x8xf32, #tpu.memory_space<vmem>>, vector<1x8x8xf32>,
    return
  }
  func.func @transform_0(%arg0: i32) -> (i32, i32, i32) {
    %c0_i32 = arith.constant 0 : i32
    %c0_i32_0 = arith.constant 0 : i32
    %c0_i32_1 = arith.constant 0 : i32
    return %arg0, %c0_i32, %c0_i32_0 : i32, i32, i32
  }
  func.func @transform_1(%arg0: i32) -> (i32, i32) {
    %c0_i32 = arith.constant 0 : i32
    %c0_i32_0 = arith.constant 0 : i32
    %c0_i32_1 = arith.constant 0 : i32
    return %c0_i32, %c0_i32_0 : i32, i32
  }
  func.func @transform_2(%arg0: i32) -> (i32, i32) {
    %c0_i32 = arith.constant 0 : i32
    %c0_i32_0 = arith.constant 0 : i32
    %c0_i32_1 = arith.constant 0 : i32
    return %c0_i32, %c0_i32_0 : i32, i32
  }
  func.func @transform_3(%arg0: i32) -> (i32, i32) {
    %c0_i32 = arith.constant 0 : i32
    %c0_i32_0 = arith.constant 0 : i32
    %c0_i32_1 = arith.constant 0 : i32
    return %c0_i32, %c0_i32_0 : i32, i32
  }
  func.func @transform_4(%arg0: i32) -> (i32, i32) {
    %c0_i32 = arith.constant 0 : i32
    %c0_i32_0 = arith.constant 0 : i32
    %c0_i32_1 = arith.constant 0 : i32
    return %c0_i32, %c0_i32_0 : i32, i32
  }
  func.func @transform_5(%arg0: i32) -> (i32, i32) {
    %c0_i32 = arith.constant 0 : i32
    %c0_i32_0 = arith.constant 0 : i32
    %c0_i32_1 = arith.constant 0 : i32
    return %c0_i32, %c0_i32_0 : i32, i32
  }
  func.func @transform_6(%arg0: i32) -> (i32, i32) {
    %c0_i32 = arith.constant 0 : i32
    %c0_i32_0 = arith.constant 0 : i32
    %c0_i32_1 = arith.constant 0 : i32
    return %c0_i32, %c0_i32_0 : i32, i32
  }
  func.func @transform_7(%arg0: i32) -> (i32, i32) {
    %c0_i32 = arith.constant 0 : i32
    %c0_i32_0 = arith.constant 0 : i32
    %c0_i32_1 = arith.constant 0 : i32
    return %c0_i32, %c0_i32_0 : i32, i32
  }
  func.func @transform_8(%arg0: i32) -> (i32, i32, i32) {
    %c0_i32 = arith.constant 0 : i32
    %c0_i32_0 = arith.constant 0 : i32
    %c0_i32_1 = arith.constant 0 : i32
    return %arg0, %c0_i32, %c0_i32_0 : i32, i32, i32
  }
  func.func @transform_9(%arg0: i32) -> (i32, i32, i32) {
    %c0_i32 = arith.constant 0 : i32
    %c0_i32_0 = arith.constant 0 : i32
    %c0_i32_1 = arith.constant 0 : i32
    return %arg0, %c0_i32, %c0_i32_0 : i32, i32, i32
  }
}

</mosaic_0001>

<llo_original>
// kernel: attention_layer_forward.1
$region0: #{attention_layer_forward.1}
  #allocation0 [shape = 'u32[]', space=smem, size = 0x4, offset = 0x4, fixed_abs, tag = 'smem constant byte address 0x4 - core index']
  #allocation1 [shape = 'u32[144,128]{1,0:T(1,128)}', space=vmem, size = 0x12000, scoped, tag = 'internal scratch']
  %s0 = inlined_call_operand.vmem [shape: f32[2,8,32], index: 0, kind: input, shape index: {}]
  %s1 = inlined_call_operand.vmem [shape: f32[32,384], index: 1, kind: input, shape index: {}]
  %s2 = inlined_call_operand.vmem [shape: f32[1,384], index: 2, kind: input, shape index: {}]
  %s3 = inlined_call_operand.vmem [shape: f32[64,8], index: 3, kind: input, shape index: {}]
  %s4 = inlined_call_operand.vmem [shape: f32[64,32], index: 4, kind: input, shape index: {}]
  %s5 = inlined_call_operand.vmem [shape: f32[64,64], index: 5, kind: input, shape index: {}]
  %s6 = inlined_call_operand.vmem [shape: f32[32,32], index: 6, kind: input, shape index: {}]
  %s7 = inlined_call_operand.vmem [shape: f32[1,32], index: 7, kind: input, shape index: {}]
  %s8 = inlined_call_operand.hbm [shape: f32[2,8,32], index: 8, kind: output, shape index: {0}]
  %s9 = inlined_call_operand.hbm [shape: f32[2,8,8], index: 9, kind: output, shape index: {1}]
  %10 = xla_tuple %s8, %s9
  %s11 = sld [smem:[#allocation0]]
  $region73: #{attention_layer_forward.1} parent=0
    _
  %s13 = ssub.s32 1, %s11
  %s14 = scalar_select 0, %s13, %s11
  $region1: #{attention_layer_forward.1} parent=0
    #allocation2 [shape = 'u8[8192]{0}', space=vmem, size = 0x2000, scoped, tag = 'output window, operand 0']
    #allocation3 [shape = 's32[2]{0}', space=sflag, size = 0x8, scoped, tag = 'scoped memory for attention_layer_forward.1']
    #allocation4 [shape = 'u8[8192]{0}', space=vmem, size = 0x2000, scoped, tag = 'output window, operand 1']
    #allocation5 [shape = 's32[2]{0}', space=sflag, size = 0x8, scoped, tag = 'scoped memory for attention_layer_forward.1']
    %15 = vsyncpa [#allocation3], 0
    %s16 = scalar_lea.sflag [#allocation3], 1
    %17 = vsyncpa %s16, 0
    %18 = vsyncpa [#allocation5], 0
    %s19 = scalar_lea.sflag [#allocation5], 1
    %20 = vsyncpa %s19, 0
    loop: start=0, step=1, limit=4
    $region2: #{attention_layer_forward.1} parent=1 // loop_pre_header
      _
    $region3: #{attention_layer_forward.1} parent=1 // loop_header
      %s22 = sphi 0, %s26
      %p23 = scmp.ge.s32.totalorder %s22, 4
      %s32 = sphi 0, %s34
      %s35 = sphi 0, %s32
      %s36 = sphi 0, %s35
      %s52 = sphi 0, %s36
      %s56 = sphi 0, %s56
      %s58 = sphi 0, %s56
      %s59 = sphi 0, %s58
      %s73 = sphi 0, %s59
      %s77 = sphi 0, %s77
      %s79 = sphi 0, %s77
      %s80 = sphi 0, %s79
      %s94 = sphi 0, %s80
      %s98 = sphi 0, %s98
      %s100 = sphi 0, %s98
      %s101 = sphi 0, %s100
      %s115 = sphi 0, %s101
      %s119 = sphi 0, %s119
      %s121 = sphi 0, %s119
      %s122 = sphi 0, %s121
      %s136 = sphi 0, %s122
      %s140 = sphi 0, %s140
      %s142 = sphi 0, %s140
      %s143 = sphi 0, %s142
      %s157 = sphi 0, %s143
      %s161 = sphi 0, %s161
      %s163 = sphi 0, %s161
      %s164 = sphi 0, %s163
      %s178 = sphi 0, %s164
      %s182 = sphi 0, %s182
      %s184 = sphi 0, %s182
      %s185 = sphi 0, %s184
      %s199 = sphi 0, %s185
      %s205 = sphi 0, %s207
      %s208 = sphi 0, %s205
      %s209 = sphi 0, %s208
      %s225 = sphi 0, %s209
      %s231 = sphi 0, %s233
      %s234 = sphi 0, %s231
      %s235 = sphi 0, %s234
      %s251 = sphi 0, %s235
    $region4: #{attention_layer_forward.1} parent=1 // loop_header_branch
      %25 = sbr.rel (%p23) target = $region8
    $region5: #{attention_layer_forward.1} parent=1 // loop_body
      %s27 = ssub.s32 %s22, 1
      %s28 = ssub.s32 %s22, 2
      %s29 = sadd.s32 %s22, 1
      %s30 = ssub.s32 %s22, %s29
      %p31 = scmp.eq.s32.totalorder %s30, 0
      %s33 = sadd.s32 %s32, 1
      %s34 = scalar_select %p31, %s32, %s33
      %p37 = pneg %p31
      %p38 = scmp.eq.s32.totalorder %s22, 1
      %p39 = por %p37, %p38
      %p40 = scmp.ne.s32.totalorder %s32, %s35
      %p41 = scmp.eq.s32.totalorder %s22, 0
      %p42 = por %p40, %p41
      %p43 = scmp.ne.s32.totalorder %s32, %s35
      %p44 = scmp.eq.s32.totalorder %s27, 1
      %p45 = por %p43, %p44
      %p46 = scmp.ne.s32.totalorder %s35, %s36
      %p47 = scmp.eq.s32.totalorder %s27, 0
      %p48 = por %p46, %p47
      %p49 = scmp.ne.s32.totalorder %s35, %s36
      %p50 = scmp.eq.s32.totalorder %s28, 1
      %p51 = por %p49, %p50
      %p53 = scmp.ne.s32.totalorder %s36, %s52
      %p54 = scmp.eq.s32.totalorder %s28, 0
      %p55 = por %p53, %p54
      %s57 = sadd.s32 %s56, 1
      %p60 = scmp.eq.s32.totalorder %s22, 1
      %p61 = scmp.ne.s32.totalorder %s56, %s58
      %p62 = scmp.eq.s32.totalorder %s22, 0
      %p63 = por %p61, %p62
      %p64 = scmp.ne.s32.totalorder %s56, %s58
      %p65 = scmp.eq.s32.totalorder %s27, 1
      %p66 = por %p64, %p65
      %p67 = scmp.ne.s32.totalorder %s58, %s59
      %p68 = scmp.eq.s32.totalorder %s27, 0
      %p69 = por %p67, %p68
      %p70 = scmp.ne.s32.totalorder %s58, %s59
      %p71 = scmp.eq.s32.totalorder %s28, 1
      %p72 = por %p70, %p71
      %p74 = scmp.ne.s32.totalorder %s59, %s73
      %p75 = scmp.eq.s32.totalorder %s28, 0
      %p76 = por %p74, %p75
      %s78 = sadd.s32 %s77, 1
      %p81 = scmp.eq.s32.totalorder %s22, 1
      %p82 = scmp.ne.s32.totalorder %s77, %s79
      %p83 = scmp.eq.s32.totalorder %s22, 0
      %p84 = por %p82, %p83
      %p85 = scmp.ne.s32.totalorder %s77, %s79
      %p86 = scmp.eq.s32.totalorder %s27, 1
      %p87 = por %p85, %p86
      %p88 = scmp.ne.s32.totalorder %s79, %s80
      %p89 = scmp.eq.s32.totalorder %s27, 0
      %p90 = por %p88, %p89
      %p91 = scmp.ne.s32.totalorder %s79, %s80
      %p92 = scmp.eq.s32.totalorder %s28, 1
      %p93 = por %p91, %p92
      %p95 = scmp.ne.s32.totalorder %s80, %s94
      %p96 = scmp.eq.s32.totalorder %s28, 0
      %p97 = por %p95, %p96
      %s99 = sadd.s32 %s98, 1
      %p102 = scmp.eq.s32.totalorder %s22, 1
      %p103 = scmp.ne.s32.totalorder %s98, %s100
      %p104 = scmp.eq.s32.totalorder %s22, 0
      %p105 = por %p103, %p104
      %p106 = scmp.ne.s32.totalorder %s98, %s100
      %p107 = scmp.eq.s32.totalorder %s27, 1
      %p108 = por %p106, %p107
      %p109 = scmp.ne.s32.totalorder %s100, %s101
      %p110 = scmp.eq.s32.totalorder %s27, 0
      %p111 = por %p109, %p110
      %p112 = scmp.ne.s32.totalorder %s100, %s101
      %p113 = scmp.eq.s32.totalorder %s28, 1
      %p114 = por %p112, %p113
      %p116 = scmp.ne.s32.totalorder %s101, %s115
      %p117 = scmp.eq.s32.totalorder %s28, 0
      %p118 = por %p116, %p117
      %s120 = sadd.s32 %s119, 1
      %p123 = scmp.eq.s32.totalorder %s22, 1
      %p124 = scmp.ne.s32.totalorder %s119, %s121
      %p125 = scmp.eq.s32.totalorder %s22, 0
      %p126 = por %p124, %p125
      %p127 = scmp.ne.s32.totalorder %s119, %s121
      %p128 = scmp.eq.s32.totalorder %s27, 1
      %p129 = por %p127, %p128
      %p130 = scmp.ne.s32.totalorder %s121, %s122
      %p131 = scmp.eq.s32.totalorder %s27, 0
      %p132 = por %p130, %p131
      %p133 = scmp.ne.s32.totalorder %s121, %s122
      %p134 = scmp.eq.s32.totalorder %s28, 1
      %p135 = por %p133, %p134
      %p137 = scmp.ne.s32.totalorder %s122, %s136
      %p138 = scmp.eq.s32.totalorder %s28, 0
      %p139 = por %p137, %p138
      %s141 = sadd.s32 %s140, 1
      %p144 = scmp.eq.s32.totalorder %s22, 1
      %p145 = scmp.ne.s32.totalorder %s140, %s142
      %p146 = scmp.eq.s32.totalorder %s22, 0
      %p147 = por %p145, %p146
      %p148 = scmp.ne.s32.totalorder %s140, %s142
      %p149 = scmp.eq.s32.totalorder %s27, 1
      %p150 = por %p148, %p149
      %p151 = scmp.ne.s32.totalorder %s142, %s143
      %p152 = scmp.eq.s32.totalorder %s27, 0
      %p153 = por %p151, %p152
      %p154 = scmp.ne.s32.totalorder %s142, %s143
      %p155 = scmp.eq.s32.totalorder %s28, 1
      %p156 = por %p154, %p155
      %p158 = scmp.ne.s32.totalorder %s143, %s157
      %p159 = scmp.eq.s32.totalorder %s28, 0
      %p160 = por %p158, %p159
      %s162 = sadd.s32 %s161, 1
      %p165 = scmp.eq.s32.totalorder %s22, 1
      %p166 = scmp.ne.s32.totalorder %s161, %s163
      %p167 = scmp.eq.s32.totalorder %s22, 0
      %p168 = por %p166, %p167
      %p169 = scmp.ne.s32.totalorder %s161, %s163
      %p170 = scmp.eq.s32.totalorder %s27, 1
      %p171 = por %p169, %p170
      %p172 = scmp.ne.s32.totalorder %s163, %s164
      %p173 = scmp.eq.s32.totalorder %s27, 0
      %p174 = por %p172, %p173
      %p175 = scmp.ne.s32.totalorder %s163, %s164
      %p176 = scmp.eq.s32.totalorder %s28, 1
      %p177 = por %p175, %p176
      %p179 = scmp.ne.s32.totalorder %s164, %s178
      %p180 = scmp.eq.s32.totalorder %s28, 0
      %p181 = por %p179, %p180
      %s183 = sadd.s32 %s182, 1
      %p186 = scmp.eq.s32.totalorder %s22, 1
      %p187 = scmp.ne.s32.totalorder %s182, %s184
      %p188 = scmp.eq.s32.totalorder %s22, 0
      %p189 = por %p187, %p188
      %p190 = scmp.ne.s32.totalorder %s182, %s184
      %p191 = scmp.eq.s32.totalorder %s27, 1
      %p192 = por %p190, %p191
      %p193 = scmp.ne.s32.totalorder %s184, %s185
      %p194 = scmp.eq.s32.totalorder %s27, 0
      %p195 = por %p193, %p194
      %p196 = scmp.ne.s32.totalorder %s184, %s185
      %p197 = scmp.eq.s32.totalorder %s28, 1
      %p198 = por %p196, %p197
      %p200 = scmp.ne.s32.totalorder %s185, %s199
      %p201 = scmp.eq.s32.totalorder %s28, 0
      %p202 = por %p200, %p201
      %s203 = ssub.s32 %s22, %s29
      %p204 = scmp.eq.s32.totalorder %s203, 0
      %s206 = sadd.s32 %s205, 1
      %s207 = scalar_select %p204, %s205, %s206
      %p210 = pneg %p204
      %p211 = scmp.eq.s32.totalorder %s22, 1
      %p212 = por %p210, %p211
      %p213 = scmp.ne.s32.totalorder %s205, %s208
      %p214 = scmp.eq.s32.totalorder %s22, 0
      %p215 = por %p213, %p214
      %p216 = scmp.ne.s32.totalorder %s205, %s208
      %p217 = scmp.eq.s32.totalorder %s27, 1
      %p218 = por %p216, %p217
      %p219 = scmp.ne.s32.totalorder %s208, %s209
      %p220 = scmp.eq.s32.totalorder %s27, 0
      %p221 = por %p219, %p220
      %p222 = scmp.ne.s32.totalorder %s208, %s209
      %p223 = scmp.eq.s32.totalorder %s28, 1
      %p224 = por %p222, %p223
      %p226 = scmp.ne.s32.totalorder %s209, %s225
      %p227 = scmp.eq.s32.totalorder %s28, 0
      %p228 = por %p226, %p227
      %s229 = ssub.s32 %s22, %s29
      %p230 = scmp.eq.s32.totalorder %s229, 0
      %s232 = sadd.s32 %s231, 1
      %s233 = scalar_select %p230, %s231, %s232
      %p236 = pneg %p230
      %p237 = scmp.eq.s32.totalorder %s22, 1
      %p238 = por %p236, %p237
      %p239 = scmp.ne.s32.totalorder %s231, %s234
      %p240 = scmp.eq.s32.totalorder %s22, 0
      %p241 = por %p239, %p240
      %p242 = scmp.ne.s32.totalorder %s231, %s234
      %p243 = scmp.eq.s32.totalorder %s27, 1
      %p244 = por %p242, %p243
      %p245 = scmp.ne.s32.totalorder %s234, %s235
      %p246 = scmp.eq.s32.totalorder %s27, 0
      %p247 = por %p245, %p246
      %p248 = scmp.ne.s32.totalorder %s234, %s235
      %p249 = scmp.eq.s32.totalorder %s28, 1
      %p250 = por %p248, %p249
      %p252 = scmp.ne.s32.totalorder %s235, %s251
      %p253 = scmp.eq.s32.totalorder %s28, 0
      %p254 = por %p252, %p253
      %p255 = scmp.le.s32.totalorder 1, %s22
      %p256 = scmp.lt.s32.totalorder %s22, 3
      %p257 = pnand %p255, %p256
      %p258 = pneg %p257
      // Predicated region
      $region9: #{attention_layer_forward.1} parent=5 // pred_check
        _
      $region10: #{attention_layer_forward.1} parent=5 // pred_check_branch
        %260 = sbr.rel (%p257) target = $region12
      $region11: #{attention_layer_forward.1} parent=5 // pred_region
        %s261 = ssub.s32 %s22, 1
        // Predicated region
        $region13: #{attention_layer_forward.1} parent=11 // pred_check
          %p262 = pneg %p69
        $region14: #{attention_layer_forward.1} parent=11 // pred_check_branch
          %264 = sbr.rel (%p262) target = $region16
        $region15: #{attention_layer_forward.1} parent=11 // pred_region
          _
        $region16: #{attention_layer_forward.1} parent=11 // pred_fallthru
          _
        // Predicated region
        $region17: #{attention_layer_forward.1} parent=11 // pred_check
          %p265 = pneg %p90
        $region18: #{attention_layer_forward.1} parent=11 // pred_check_branch
          %267 = sbr.rel (%p265) target = $region20
        $region19: #{attention_layer_forward.1} parent=11 // pred_region
          _
        $region20: #{attention_layer_forward.1} parent=11 // pred_fallthru
          _
        // Predicated region
        $region21: #{attention_layer_forward.1} parent=11 // pred_check
          %p268 = pneg %p111
        $region22: #{attention_layer_forward.1} parent=11 // pred_check_branch
          %270 = sbr.rel (%p268) target = $region24
        $region23: #{attention_layer_forward.1} parent=11 // pred_region
          _
        $region24: #{attention_layer_forward.1} parent=11 // pred_fallthru
          _
        // Predicated region
        $region25: #{attention_layer_forward.1} parent=11 // pred_check
          %p271 = pneg %p132
        $region26: #{attention_layer_forward.1} parent=11 // pred_check_branch
          %273 = sbr.rel (%p271) target = $region28
        $region27: #{attention_layer_forward.1} parent=11 // pred_region
          _
        $region28: #{attention_layer_forward.1} parent=11 // pred_fallthru
          _
        // Predicated region
        $region29: #{attention_layer_forward.1} parent=11 // pred_check
          %p274 = pneg %p153
        $region30: #{attention_layer_forward.1} parent=11 // pred_check_branch
          %276 = sbr.rel (%p274) target = $region32
        $region31: #{attention_layer_forward.1} parent=11 // pred_region
          _
        $region32: #{attention_layer_forward.1} parent=11 // pred_fallthru
          _
        // Predicated region
        $region33: #{attention_layer_forward.1} parent=11 // pred_check
          %p277 = pneg %p174
        $region34: #{attention_layer_forward.1} parent=11 // pred_check_branch
          %279 = sbr.rel (%p277) target = $region36
        $region35: #{attention_layer_forward.1} parent=11 // pred_region
          _
        $region36: #{attention_layer_forward.1} parent=11 // pred_fallthru
          _
        // Predicated region
        $region37: #{attention_layer_forward.1} parent=11 // pred_check
          %p280 = pneg %p195
        $region38: #{attention_layer_forward.1} parent=11 // pred_check_branch
          %282 = sbr.rel (%p280) target = $region40
        $region39: #{attention_layer_forward.1} parent=11 // pred_region
          _
        $region40: #{attention_layer_forward.1} parent=11 // pred_fallthru
          _
      $region12: #{attention_layer_forward.1} parent=5 // pred_fallthru
        _
      %p283 = scmp.lt.s32.totalorder %s22, 2
      // Predicated region
      $region41: #{attention_layer_forward.1} parent=5 // pred_check
        %p284 = pneg %p283
      $region42: #{attention_layer_forward.1} parent=5 // pred_check_branch
        %286 = sbr.rel (%p284) target = $region44
      $region43: #{attention_layer_forward.1} parent=5 // pred_region
        // Predicated region
        $region45: #{attention_layer_forward.1} parent=43 // pred_check
          %p287 = pneg %p42
        $region46: #{attention_layer_forward.1} parent=43 // pred_check_branch
          %289 = sbr.rel (%p287) target = $region48
        $region47: #{attention_layer_forward.1} parent=43 // pred_region
          %p290 = scmp.lt.s32.totalorder %s22, 1
          %s291 = scalar_select %p290, %s22, 1
          %s292 = smul.addr %s291, 8
          %s293 = scalar_lea.vmem %s0, %s292
        $region48: #{attention_layer_forward.1} parent=43 // pred_fallthru
          _
      $region44: #{attention_layer_forward.1} parent=5 // pred_fallthru
        _
      %p294 = scmp.le.s32.totalorder 1, %s22
      %p295 = scmp.lt.s32.totalorder %s22, 3
      %p296 = pnand %p294, %p295
      %p297 = pneg %p296
      // Predicated region
      $region49: #{attention_layer_forward.1} parent=5 // pred_check
        _
      $region50: #{attention_layer_forward.1} parent=5 // pred_check_branch
        %299 = sbr.rel (%p296) target = $region52
      $region51: #{attention_layer_forward.1} parent=5 // pred_region
        %s300 = ssub.s32 %s22, 1
        %p301 = scmp.lt.s32.totalorder %s27, 1
        %s302 = scalar_select %p301, %s27, 1
        %s303 = smul.addr %s302, 8
        %s304 = scalar_lea.vmem %s0, %s303
        %p305 = pneg %p48
        %p306 = pneg %p45
        %p307 = pneg %p69
        %p308 = pneg %p66
        %p309 = pneg %p90
        %p310 = pneg %p87
        %p311 = pneg %p111
        %p312 = pneg %p108
        %p313 = pneg %p132
        %p314 = pneg %p129
        %p315 = pneg %p153
        %p316 = pneg %p150
        %p317 = pneg %p174
        %p318 = pneg %p171
        %p319 = pneg %p195
        %p320 = pneg %p192
        %p321 = pneg %p221
        %p322 = pneg %p218
        %s323 = sand.u32 %s208, 1
        %s324 = scalar_lea.sflag [#allocation3], %s323
        %s325 = sand.u32 %s208, 1
        %s326 = smul.addr %s325, 8
        %s327 = scalar_lea.vmem [#allocation2], %s326
        %p328 = pneg %p247
        %p329 = pneg %p244
        %s330 = sand.u32 %s234, 1
        %s331 = scalar_lea.sflag [#allocation5], %s330
        %s332 = sand.u32 %s234, 1
        %s333 = smul.addr %s332, 8
        %s334 = scalar_lea.vmem [#allocation4], %s333
        %p335 = scmp.lt.s32.totalorder %s27, 1
        %s336 = scalar_select %p335, %s27, 1
        %s337 = smul.addr %s336, 8
        %s338 = scalar_lea.vmem %s0, %s337
        %v339 = vld [vmem:[%s338] sm:$0xff]
        %v340 = vld [vmem:[%s1] sm:$0xff]
        %v341 = vld [vmem:[%s1 + $0x8] sm:$0xff]
        %v342 = vld [vmem:[%s1 + $0x10] sm:$0xff]
        %v343 = vld [vmem:[%s1 + $0x18] sm:$0xff]
        %v344 = vld [vmem:[%s1 + $0x20] sm:$0xff]
        %v345 = vld [vmem:[%s1 + $0x28] sm:$0xff]
        %v346 = vld [vmem:[%s1 + $0x30] sm:$0xff]
        %v347 = vld [vmem:[%s1 + $0x38] sm:$0xff]
        %v348 = vld [vmem:[%s1 + $0x40] sm:$0xff]
        %v349 = vld [vmem:[%s1 + $0x48] sm:$0xff]
        %v350 = vld [vmem:[%s1 + $0x50] sm:$0xff]
        %v351 = vld [vmem:[%s1 + $0x58] sm:$0xff]
        %v352 = vld [vmem:[%s2] sm:$0x7]
        %v354 = vlaneseq
        %v355 = vshrl.u32 %v354, 7
        %v356 = vsub.s32 0, %v355
        %v357 = vrot.slane %v352, %v356
        %v358 = vlaneseq
        %v359 = vshrl.u32 %v358, 7
        %v360 = vsub.s32 1, %v359
        %v361 = vrot.slane %v352, %v360
        %v362 = vlaneseq
        %v363 = vshrl.u32 %v362, 7
        %v364 = vsub.s32 2, %v363
        %v365 = vrot.slane %v352, %v364
        %vm369 = vcmask 261120
        %v371 = vsel %vm369, %v339, 0
        %373 = vmatprep.subr.mxu0 %v341
        %374 = vmatpush1.msra.mxu0 %v340
        %375 = vmatprep.subr.mxu0 %v344
        %376 = vmatpush1.msra.mxu0 %v343
        %377 = vmatprep.subr.mxu0 %v347
        %378 = vmatpush1.msra.mxu0 %v346
        %379 = vmatprep.subr.mxu0 %v350
        %380 = vmatpush1.msra.mxu0 %v349
        %381 = vmatprep.subr.mxu0 0.0
        %382 = vmatpush1.msra.mxu0 0.0
        %383 = vmatprep.subr.mxu0 0.0
        %384 = vmatpush1.msra.mxu0 0.0
        %385 = vmatprep.subr.mxu0 0.0
        %386 = vmatpush1.msra.mxu0 0.0
        %387 = vmatprep.subr.mxu0 0.0
        %388 = vmatpush1.msra.mxu0 0.0
        %389 = vmatprep.subr.mxu0 0.0
        %390 = vmatpush1.msra.mxu0 0.0
        %391 = vmatprep.subr.mxu0 0.0
        %392 = vmatpush1.msra.mxu0 0.0
        %393 = vmatprep.subr.mxu0 0.0
        %394 = vmatpush1.msra.mxu0 0.0
        %395 = vmatprep.subr.mxu0 0.0
        %396 = vmatpush1.msra.mxu0 0.0
        %397 = vmatprep.subr.mxu0 0.0
        %398 = vmatpush1.msra.mxu0 0.0
        %399 = vmatprep.subr.mxu0 0.0
        %400 = vmatpush1.msra.mxu0 0.0
        %401 = vmatprep.subr.mxu0 0.0
        %402 = vmatpush1.msra.mxu0 0.0
        %403 = vmatprep.subr.mxu0 0.0
        %404 = vmatpush1.msra.mxu0 0.0
        %405 = vmatprep.subr.mxu0 0.0
        %406 = vmatpush1.msra.mxu0 0.0
        %407 = vmatprep.subr.mxu0 0.0
        %408 = vmatpush1.msra.mxu0 0.0
        %409 = vmatprep.subr.mxu0 0.0
        %410 = vmatpush1.msra.mxu0 0.0
        %411 = vmatprep.subr.mxu0 0.0
        %412 = vmatpush1.msra.mxu0 0.0
        %413 = vmatprep.subr.mxu0 0.0
        %414 = vmatpush1.msra.mxu0 0.0
        %415 = vmatprep.subr.mxu0 0.0
        %416 = vmatpush1.msra.mxu0 0.0
        %417 = vmatprep.subr.mxu0 0.0
        %418 = vmatpush1.msra.mxu0 0.0
        %419 = vmatprep.subr.mxu0 0.0
        %420 = vmatpush1.msra.mxu0 0.0
        %421 = vmatprep.subr.mxu0 0.0
        %422 = vmatpush1.msra.mxu0 0.0
        %423 = vmatprep.subr.mxu0 0.0
        %424 = vmatpush1.msra.mxu0 0.0
        %425 = vmatprep.subr.mxu0 0.0
        %426 = vmatpush1.msra.mxu0 0.0
        %427 = vmatprep.subr.mxu0 0.0
        %428 = vmatpush1.msra.mxu0 0.0
        %429 = vmatprep.subr.mxu0 0.0
        %430 = vmatpush1.msra.mxu0 0.0
        %431 = vmatprep.subr.mxu0 0.0
        %432 = vmatpush1.msra.mxu0 0.0
        %433 = vmatprep.subr.mxu0 0.0
        %434 = vmatpush1.msra.mxu0 0.0
        %435 = vmatprep.subr.mxu0 0.0
        %436 = vmatpush1.msra.mxu0 0.0
        %437 = vmatprep.mubr.f32.mxu0 0.0
        %438 = vmatmul.mubr.f32.gmra.mrb[0].mxu0 %v371
        %v439 = vpop.f32.mrb[0].mxu0
        %v440 = vadd.f32 %v357, %v439
        %v441 = vpop.f32.mrb[0].mxu0
        %v442 = vadd.f32 %v361, %v441
        %443 = vdwg.mxu0
        %444 = vmatprep.subr.mxu0 0.0
        %445 = vmatpush1.msra.mxu0 %v342
        %446 = vmatprep.subr.mxu0 0.0
        %447 = vmatpush1.msra.mxu0 %v345
        %448 = vmatprep.subr.mxu0 0.0
        %449 = vmatpush1.msra.mxu0 %v348
        %450 = vmatprep.subr.mxu0 0.0
        %451 = vmatpush1.msra.mxu0 %v351
        %452 = vmatprep.subr.mxu0 0.0
        %453 = vmatpush1.msra.mxu0 0.0
        %454 = vmatprep.subr.mxu0 0.0
        %455 = vmatpush1.msra.mxu0 0.0
        %456 = vmatprep.subr.mxu0 0.0
        %457 = vmatpush1.msra.mxu0 0.0
        %458 = vmatprep.subr.mxu0 0.0
        %459 = vmatpush1.msra.mxu0 0.0
        %460 = vmatprep.subr.mxu0 0.0
        %461 = vmatpush1.msra.mxu0 0.0
        %462 = vmatprep.subr.mxu0 0.0
        %463 = vmatpush1.msra.mxu0 0.0
        %464 = vmatprep.subr.mxu0 0.0
        %465 = vmatpush1.msra.mxu0 0.0
        %466 = vmatprep.subr.mxu0 0.0
        %467 = vmatpush1.msra.mxu0 0.0
        %468 = vmatprep.subr.mxu0 0.0
        %469 = vmatpush1.msra.mxu0 0.0
        %470 = vmatprep.subr.mxu0 0.0
        %471 = vmatpush1.msra.mxu0 0.0
        %472 = vmatprep.subr.mxu0 0.0
        %473 = vmatpush1.msra.mxu0 0.0
        %474 = vmatprep.subr.mxu0 0.0
        %475 = vmatpush1.msra.mxu0 0.0
        %476 = vmatprep.subr.mxu0 0.0
        %477 = vmatpush1.msra.mxu0 0.0
        %478 = vmatprep.subr.mxu0 0.0
        %479 = vmatpush1.msra.mxu0 0.0
        %480 = vmatprep.subr.mxu0 0.0
        %481 = vmatpush1.msra.mxu0 0.0
        %482 = vmatprep.subr.mxu0 0.0
        %483 = vmatpush1.msra.mxu0 0.0
        %484 = vmatprep.subr.mxu0 0.0
        %485 = vmatpush1.msra.mxu0 0.0
        %486 = vmatprep.subr.mxu0 0.0
        %487 = vmatpush1.msra.mxu0 0.0
        %488 = vmatprep.subr.mxu0 0.0
        %489 = vmatpush1.msra.mxu0 0.0
        %490 = vmatprep.subr.mxu0 0.0
        %491 = vmatpush1.msra.mxu0 0.0
        %492 = vmatprep.subr.mxu0 0.0
        %493 = vmatpush1.msra.mxu0 0.0
        %494 = vmatprep.subr.mxu0 0.0
        %495 = vmatpush1.msra.mxu0 0.0
        %496 = vmatprep.subr.mxu0 0.0
        %497 = vmatpush1.msra.mxu0 0.0
        %498 = vmatprep.subr.mxu0 0.0
        %499 = vmatpush1.msra.mxu0 0.0
        %500 = vmatprep.subr.mxu0 0.0
        %501 = vmatpush1.msra.mxu0 0.0
        %502 = vmatprep.subr.mxu0 0.0
        %503 = vmatpush1.msra.mxu0 0.0
        %504 = vmatprep.subr.mxu0 0.0
        %505 = vmatpush1.msra.mxu0 0.0
        %506 = vmatprep.subr.mxu0 0.0
        %507 = vmatpush1.msra.mxu0 0.0
        %508 = vmatprep.mubr.f32.mxu0 0.0
        %509 = vmatmul.mubr.f32.gmra.mrb[0].mxu0 %v371
        %v510 = vpop.f32.mrb[0].mxu0
        %v511 = vadd.f32 %v365, %v510
        %v512 = vpop.f32.mrb[0].mxu0
        %513 = vdwg.mxu0
        %v514 = vld [vmem:[%s3] sm:$0xff]
        %v515 = vld [vmem:[%s3 + $0x8] sm:$0xff]
        %v516 = vld [vmem:[%s3 + $0x10] sm:$0xff]
        %v517 = vld [vmem:[%s3 + $0x18] sm:$0xff]
        %v518 = vld [vmem:[%s3 + $0x20] sm:$0xff]
        %v519 = vld [vmem:[%s3 + $0x28] sm:$0xff]
        %v520 = vld [vmem:[%s3 + $0x30] sm:$0xff]
        %v521 = vld [vmem:[%s3 + $0x38] sm:$0xff]
        %v522 = vld [vmem:[%s4] sm:$0xff]
        %v523 = vld [vmem:[%s4 + $0x8] sm:$0xff]
        %v524 = vld [vmem:[%s4 + $0x10] sm:$0xff]
        %v525 = vld [vmem:[%s4 + $0x18] sm:$0xff]
        %v526 = vld [vmem:[%s4 + $0x20] sm:$0xff]
        %v527 = vld [vmem:[%s4 + $0x28] sm:$0xff]
        %v528 = vld [vmem:[%s4 + $0x30] sm:$0xff]
        %v529 = vld [vmem:[%s4 + $0x38] sm:$0xff]
        %vm530 = vcmask 64512
        %v532 = vsel %vm530, %v514, 0
        %v535 = vsel %vm530, %v515, 0
        %v538 = vsel %vm530, %v516, 0
        %v541 = vsel %vm530, %v517, 0
        %v544 = vsel %vm530, %v518, 0
        %v547 = vsel %vm530, %v519, 0
        %v550 = vsel %vm530, %v520, 0
        %v553 = vsel %vm530, %v521, 0
        %555 = vmatprep.subr.mxu0 0.0
        %556 = vmatpush1.msra.mxu0 %v442
        %557 = vmatprep.subr.mxu0 0.0
        %558 = vmatpush1.msra.mxu0 0.0
        %559 = vmatprep.subr.mxu0 0.0
        %560 = vmatpush1.msra.mxu0 0.0
        %561 = vmatprep.subr.mxu0 0.0
        %562 = vmatpush1.msra.mxu0 0.0
        %563 = vmatprep.subr.mxu0 0.0
        %564 = vmatpush1.msra.mxu0 0.0
        %565 = vmatprep.subr.mxu0 0.0
        %566 = vmatpush1.msra.mxu0 0.0
        %567 = vmatprep.subr.mxu0 0.0
        %568 = vmatpush1.msra.mxu0 0.0
        %569 = vmatprep.subr.mxu0 0.0
        %570 = vmatpush1.msra.mxu0 0.0
        %571 = vmatprep.subr.mxu0 0.0
        %572 = vmatpush1.msra.mxu0 0.0
        %573 = vmatprep.subr.mxu0 0.0
        %574 = vmatpush1.msra.mxu0 0.0
        %575 = vmatprep.subr.mxu0 0.0
        %576 = vmatpush1.msra.mxu0 0.0
        %577 = vmatprep.subr.mxu0 0.0
        %578 = vmatpush1.msra.mxu0 0.0
        %579 = vmatprep.subr.mxu0 0.0
        %580 = vmatpush1.msra.mxu0 0.0
        %581 = vmatprep.subr.mxu0 0.0
        %582 = vmatpush1.msra.mxu0 0.0
        %583 = vmatprep.subr.mxu0 0.0
        %584 = vmatpush1.msra.mxu0 0.0
        %585 = vmatprep.subr.mxu0 0.0
        %586 = vmatpush1.msra.mxu0 0.0
        %587 = vmatprep.subr.mxu0 0.0
        %588 = vmatpush1.msra.mxu0 0.0
        %589 = vmatprep.subr.mxu0 0.0
        %590 = vmatpush1.msra.mxu0 0.0
        %591 = vmatprep.subr.mxu0 0.0
        %592 = vmatpush1.msra.mxu0 0.0
        %593 = vmatprep.subr.mxu0 0.0
        %594 = vmatpush1.msra.mxu0 0.0
        %595 = vmatprep.subr.mxu0 0.0
        %596 = vmatpush1.msra.mxu0 0.0
        %597 = vmatprep.subr.mxu0 0.0
        %598 = vmatpush1.msra.mxu0 0.0
        %599 = vmatprep.subr.mxu0 0.0
        %600 = vmatpush1.msra.mxu0 0.0
        %601 = vmatprep.subr.mxu0 0.0
        %602 = vmatpush1.msra.mxu0 0.0
        %603 = vmatprep.subr.mxu0 0.0
        %604 = vmatpush1.msra.mxu0 0.0
        %605 = vmatprep.subr.mxu0 0.0
        %606 = vmatpush1.msra.mxu0 0.0
        %607 = vmatprep.subr.mxu0 0.0
        %608 = vmatpush1.msra.mxu0 0.0
        %609 = vmatprep.subr.mxu0 0.0
        %610 = vmatpush1.msra.mxu0 0.0
        %611 = vmatprep.subr.mxu0 0.0
        %612 = vmatpush1.msra.mxu0 0.0
        %613 = vmatprep.subr.mxu0 0.0
        %614 = vmatpush1.msra.mxu0 0.0
        %615 = vmatprep.subr.mxu0 0.0
        %616 = vmatpush1.msra.mxu0 0.0
        %617 = vmatprep.subr.mxu0 0.0
        %618 = vmatpush1.msra.mxu0 0.0
        %619 = vmatprep.mubr.f32.mxu0 0.0
        %620 = vmatmul.mubr.f32.gmra.mrb[0].mxu0 %v532
        %v621 = vpop.f32.mrb[0].mxu0
        %v622 = vadd.f32 0.0, %v621
        %v623 = vpop.f32.mrb[0].mxu0
        %624 = vmatprep.mubr.f32.mxu0 0.0
        %625 = vmatmul.mubr.f32.gmra.mrb[0].mxu0 %v535
        %v626 = vpop.f32.mrb[0].mxu0
        %v627 = vadd.f32 0.0, %v626
        %v628 = vpop.f32.mrb[0].mxu0
        %629 = vmatprep.mubr.f32.mxu0 0.0
        %630 = vmatmul.mubr.f32.gmra.mrb[0].mxu0 %v538
        %v631 = vpop.f32.mrb[0].mxu0
        %v632 = vadd.f32 0.0, %v631
        %v633 = vpop.f32.mrb[0].mxu0
        %634 = vmatprep.mubr.f32.mxu0 0.0
        %635 = vmatmul.mubr.f32.gmra.mrb[0].mxu0 %v541
        %v636 = vpop.f32.mrb[0].mxu0
        %v637 = vadd.f32 0.0, %v636
        %v638 = vpop.f32.mrb[0].mxu0
        %639 = vmatprep.mubr.f32.mxu0 0.0
        %640 = vmatmul.mubr.f32.gmra.mrb[0].mxu0 %v544
        %v641 = vpop.f32.mrb[0].mxu0
        %v642 = vadd.f32 0.0, %v641
        %v643 = vpop.f32.mrb[0].mxu0
        %644 = vmatprep.mubr.f32.mxu0 0.0
        %645 = vmatmul.mubr.f32.gmra.mrb[0].mxu0 %v547
        %v646 = vpop.f32.mrb[0].mxu0
        %v647 = vadd.f32 0.0, %v646
        %v648 = vpop.f32.mrb[0].mxu0
        %649 = vmatprep.mubr.f32.mxu0 0.0
        %650 = vmatmul.mubr.f32.gmra.mrb[0].mxu0 %v550
        %v651 = vpop.f32.mrb[0].mxu0
        %v652 = vadd.f32 0.0, %v651
        %v653 = vpop.f32.mrb[0].mxu0
        %654 = vmatprep.mubr.f32.mxu0 0.0
        %655 = vmatmul.mubr.f32.gmra.mrb[0].mxu0 %v553
        %v656 = vpop.f32.mrb[0].mxu0
        %v657 = vadd.f32 0.0, %v656
        %v658 = vpop.f32.mrb[0].mxu0
        %659 = vdwg.mxu0
        %v660 = vmul.f32 %v622, %v522
        %v661 = vmul.f32 %v627, %v523
        %v662 = vmul.f32 %v632, %v524
        %v663 = vmul.f32 %v637, %v525
        %v664 = vmul.f32 %v642, %v526
        %v665 = vmul.f32 %v647, %v527
        %v666 = vmul.f32 %v652, %v528
        %v667 = vmul.f32 %v657, %v529
        %668 = vmatprep.subr.mxu0 0.0
        %669 = vmatpush1.msra.mxu0 %v511
        %670 = vmatprep.subr.mxu0 0.0
        %671 = vmatpush1.msra.mxu0 0.0
        %672 = vmatprep.subr.mxu0 0.0
        %673 = vmatpush1.msra.mxu0 0.0
        %674 = vmatprep.subr.mxu0 0.0
        %675 = vmatpush1.msra.mxu0 0.0
        %676 = vmatprep.subr.mxu0 0.0
        %677 = vmatpush1.msra.mxu0 0.0
        %678 = vmatprep.subr.mxu0 0.0
        %679 = vmatpush1.msra.mxu0 0.0
        %680 = vmatprep.subr.mxu0 0.0
        %681 = vmatpush1.msra.mxu0 0.0
        %682 = vmatprep.subr.mxu0 0.0
        %683 = vmatpush1.msra.mxu0 0.0
        %684 = vmatprep.subr.mxu0 0.0
        %685 = vmatpush1.msra.mxu0 0.0
        %686 = vmatprep.subr.mxu0 0.0
        %687 = vmatpush1.msra.mxu0 0.0
        %688 = vmatprep.subr.mxu0 0.0
        %689 = vmatpush1.msra.mxu0 0.0
        %690 = vmatprep.subr.mxu0 0.0
        %691 = vmatpush1.msra.mxu0 0.0
        %692 = vmatprep.subr.mxu0 0.0
        %693 = vmatpush1.msra.mxu0 0.0
        %694 = vmatprep.subr.mxu0 0.0
        %695 = vmatpush1.msra.mxu0 0.0
        %696 = vmatprep.subr.mxu0 0.0
        %697 = vmatpush1.msra.mxu0 0.0
        %698 = vmatprep.subr.mxu0 0.0
        %699 = vmatpush1.msra.mxu0 0.0
        %700 = vmatprep.subr.mxu0 0.0
        %701 = vmatpush1.msra.mxu0 0.0
        %702 = vmatprep.subr.mxu0 0.0
        %703 = vmatpush1.msra.mxu0 0.0
        %704 = vmatprep.subr.mxu0 0.0
        %705 = vmatpush1.msra.mxu0 0.0
        %706 = vmatprep.subr.mxu0 0.0
        %707 = vmatpush1.msra.mxu0 0.0
        %708 = vmatprep.subr.mxu0 0.0
        %709 = vmatpush1.msra.mxu0 0.0
        %710 = vmatprep.subr.mxu0 0.0
        %711 = vmatpush1.msra.mxu0 0.0
        %712 = vmatprep.subr.mxu0 0.0
        %713 = vmatpush1.msra.mxu0 0.0
        %714 = vmatprep.subr.mxu0 0.0
        %715 = vmatpush1.msra.mxu0 0.0
        %716 = vmatprep.subr.mxu0 0.0
        %717 = vmatpush1.msra.mxu0 0.0
        %718 = vmatprep.subr.mxu0 0.0
        %719 = vmatpush1.msra.mxu0 0.0
        %720 = vmatprep.subr.mxu0 0.0
        %721 = vmatpush1.msra.mxu0 0.0
        %722 = vmatprep.subr.mxu0 0.0
        %723 = vmatpush1.msra.mxu0 0.0
        %724 = vmatprep.subr.mxu0 0.0
        %725 = vmatpush1.msra.mxu0 0.0
        %726 = vmatprep.subr.mxu0 0.0
        %727 = vmatpush1.msra.mxu0 0.0
        %728 = vmatprep.subr.mxu0 0.0
        %729 = vmatpush1.msra.mxu0 0.0
        %730 = vmatprep.subr.mxu0 0.0
        %731 = vmatpush1.msra.mxu0 0.0
        %732 = vmatprep.mubr.f32.mxu0 0.0
        %733 = vmatmul.mubr.f32.gmra.mrb[0].mxu0 %v532
        %v734 = vpop.f32.mrb[0].mxu0
        %v735 = vadd.f32 0.0, %v734
        %v736 = vpop.f32.mrb[0].mxu0
        %737 = vmatprep.mubr.f32.mxu0 0.0
        %738 = vmatmul.mubr.f32.gmra.mrb[0].mxu0 %v535
        %v739 = vpop.f32.mrb[0].mxu0
        %v740 = vadd.f32 0.0, %v739
        %v741 = vpop.f32.mrb[0].mxu0
        %742 = vmatprep.mubr.f32.mxu0 0.0
        %743 = vmatmul.mubr.f32.gmra.mrb[0].mxu0 %v538
        %v744 = vpop.f32.mrb[0].mxu0
        %v745 = vadd.f32 0.0, %v744
        %v746 = vpop.f32.mrb[0].mxu0
        %747 = vmatprep.mubr.f32.mxu0 0.0
        %748 = vmatmul.mubr.f32.gmra.mrb[0].mxu0 %v541
        %v749 = vpop.f32.mrb[0].mxu0
        %v750 = vadd.f32 0.0, %v749
        %v751 = vpop.f32.mrb[0].mxu0
        %752 = vmatprep.mubr.f32.mxu0 0.0
        %753 = vmatmul.mubr.f32.gmra.mrb[0].mxu0 %v544
        %v754 = vpop.f32.mrb[0].mxu0
        %v755 = vadd.f32 0.0, %v754
        %v756 = vpop.f32.mrb[0].mxu0
        %757 = vmatprep.mubr.f32.mxu0 0.0
        %758 = vmatmul.mubr.f32.gmra.mrb[0].mxu0 %v547
        %v759 = vpop.f32.mrb[0].mxu0
        %v760 = vadd.f32 0.0, %v759
        %v761 = vpop.f32.mrb[0].mxu0
        %762 = vmatprep.mubr.f32.mxu0 0.0
        %763 = vmatmul.mubr.f32.gmra.mrb[0].mxu0 %v550
        %v764 = vpop.f32.mrb[0].mxu0
        %v765 = vadd.f32 0.0, %v764
        %v766 = vpop.f32.mrb[0].mxu0
        %767 = vmatprep.mubr.f32.mxu0 0.0
        %768 = vmatmul.mubr.f32.gmra.mrb[0].mxu0 %v553
        %v769 = vpop.f32.mrb[0].mxu0
        %v770 = vadd.f32 0.0, %v769
        %v771 = vpop.f32.mrb[0].mxu0
        %772 = vdwg.mxu0
        %v773 = vmul.f32 %v735, %v522
        %v774 = vmul.f32 %v740, %v523
        %v775 = vmul.f32 %v745, %v524
        %v776 = vmul.f32 %v750, %v525
        %v777 = vmul.f32 %v755, %v526
        %v778 = vmul.f32 %v760, %v527
        %v779 = vmul.f32 %v765, %v528
        %v780 = vmul.f32 %v770, %v529
        %v782 = vsel %vm369, %v440, 0
        %v785 = vsel %vm369, %v660, 0
        %v788 = vsel %vm369, %v661, 0
        %v791 = vsel %vm369, %v662, 0
        %v794 = vsel %vm369, %v663, 0
        %v797 = vsel %vm369, %v664, 0
        %v800 = vsel %vm369, %v665, 0
        %v803 = vsel %vm369, %v666, 0
        %v806 = vsel %vm369, %v667, 0
        %808 = vmatprep.subr.mxu0 0.0
        %809 = vmatpush1.xpose.msra.mxu0 %v785
        %810 = vmatprep.subr.mxu0 0.0
        %811 = vmatpush1.xpose.msra.mxu0 %v788
        %812 = vmatprep.subr.mxu0 0.0
        %813 = vmatpush1.xpose.msra.mxu0 %v791
        %814 = vmatprep.subr.mxu0 0.0
        %815 = vmatpush1.xpose.msra.mxu0 %v794
        %816 = vmatprep.subr.mxu0 0.0
        %817 = vmatpush1.xpose.msra.mxu0 %v797
        %818 = vmatprep.subr.mxu0 0.0
        %819 = vmatpush1.xpose.msra.mxu0 %v800
        %820 = vmatprep.subr.mxu0 0.0
        %821 = vmatpush1.xpose.msra.mxu0 %v803
        %822 = vmatprep.subr.mxu0 0.0
        %823 = vmatpush1.xpose.msra.mxu0 %v806
        %824 = vmatprep.subr.mxu0 0.0
        %825 = vmatpush1.xpose.msra.mxu0 0.0
        %826 = vmatprep.subr.mxu0 0.0
        %827 = vmatpush1.xpose.msra.mxu0 0.0
        %828 = vmatprep.subr.mxu0 0.0
        %829 = vmatpush1.xpose.msra.mxu0 0.0
        %830 = vmatprep.subr.mxu0 0.0
        %831 = vmatpush1.xpose.msra.mxu0 0.0
        %832 = vmatprep.subr.mxu0 0.0
        %833 = vmatpush1.xpose.msra.mxu0 0.0
        %834 = vmatprep.subr.mxu0 0.0
        %835 = vmatpush1.xpose.msra.mxu0 0.0
        %836 = vmatprep.subr.mxu0 0.0
        %837 = vmatpush1.xpose.msra.mxu0 0.0
        %838 = vmatprep.subr.mxu0 0.0
        %839 = vmatpush1.xpose.msra.mxu0 0.0
        %840 = vmatprep.subr.mxu0 0.0
        %841 = vmatpush1.xpose.msra.mxu0 0.0
        %842 = vmatprep.subr.mxu0 0.0
        %843 = vmatpush1.xpose.msra.mxu0 0.0
        %844 = vmatprep.subr.mxu0 0.0
        %845 = vmatpush1.xpose.msra.mxu0 0.0
        %846 = vmatprep.subr.mxu0 0.0
        %847 = vmatpush1.xpose.msra.mxu0 0.0
        %848 = vmatprep.subr.mxu0 0.0
        %849 = vmatpush1.xpose.msra.mxu0 0.0
        %850 = vmatprep.subr.mxu0 0.0
        %851 = vmatpush1.xpose.msra.mxu0 0.0
        %852 = vmatprep.subr.mxu0 0.0
        %853 = vmatpush1.xpose.msra.mxu0 0.0
        %854 = vmatprep.subr.mxu0 0.0
        %855 = vmatpush1.xpose.msra.mxu0 0.0
        %856 = vmatprep.subr.mxu0 0.0
        %857 = vmatpush1.xpose.msra.mxu0 0.0
        %858 = vmatprep.subr.mxu0 0.0
        %859 = vmatpush1.xpose.msra.mxu0 0.0
        %860 = vmatprep.subr.mxu0 0.0
        %861 = vmatpush1.xpose.msra.mxu0 0.0
        %862 = vmatprep.subr.mxu0 0.0
        %863 = vmatpush1.xpose.msra.mxu0 0.0
        %864 = vmatprep.subr.mxu0 0.0
        %865 = vmatpush1.xpose.msra.mxu0 0.0
        %866 = vmatprep.subr.mxu0 0.0
        %867 = vmatpush1.xpose.msra.mxu0 0.0
        %868 = vmatprep.subr.mxu0 0.0
        %869 = vmatpush1.xpose.msra.mxu0 0.0
        %870 = vmatprep.subr.mxu0 0.0
        %871 = vmatpush1.xpose.msra.mxu0 0.0
        %872 = vmatprep.mubr.f32.mxu0 0.0
        %873 = vmatmul.mubr.f32.gmra.mrb[0].mxu0 %v782
        %v874 = vpop.f32.mrb[0].mxu0
        %v875 = vadd.f32 0.0, %v874
        %v876 = vpop.f32.mrb[0].mxu0
        %877 = vdwg.mxu0
        %vm878 = vcmask 523264
        %v879 = vsel %vm878, %v875, -inf
        %880 = vmax.xlane.f32.xlu0 %v879
        %v881 = vpop.xlane.xlu0 %880
        %v882 = vsub.f32 %v875, %v881
        %v883 = vmul.f32 %v882, 1.442695
        %v884 = vpow.pop %v883
        %v885 = vld [vmem:[%s5] sm:$0xff]
        %v886 = vld [vmem:[%s5 + $0x8] sm:$0xff]
        %v887 = vld [vmem:[%s5 + $0x10] sm:$0xff]
        %v888 = vld [vmem:[%s5 + $0x18] sm:$0xff]
        %v889 = vld [vmem:[%s5 + $0x20] sm:$0xff]
        %v890 = vld [vmem:[%s5 + $0x28] sm:$0xff]
        %v891 = vld [vmem:[%s5 + $0x30] sm:$0xff]
        %v892 = vld [vmem:[%s5 + $0x38] sm:$0xff]
        %v894 = vsel %vm878, %v884, 0
        %896 = vmatprep.subr.mxu0 0.0
        %897 = vmatpush1.msra.mxu0 %v885
        %898 = vmatprep.subr.mxu0 0.0
        %899 = vmatpush1.msra.mxu0 %v886
        %900 = vmatprep.subr.mxu0 0.0
        %901 = vmatpush1.msra.mxu0 %v887
        %902 = vmatprep.subr.mxu0 0.0
        %903 = vmatpush1.msra.mxu0 %v888
        %904 = vmatprep.subr.mxu0 0.0
        %905 = vmatpush1.msra.mxu0 %v889
        %906 = vmatprep.subr.mxu0 0.0
        %907 = vmatpush1.msra.mxu0 %v890
        %908 = vmatprep.subr.mxu0 0.0
        %909 = vmatpush1.msra.mxu0 %v891
        %910 = vmatprep.subr.mxu0 0.0
        %911 = vmatpush1.msra.mxu0 %v892
        %912 = vmatprep.subr.mxu0 0.0
        %913 = vmatpush1.msra.mxu0 0.0
        %914 = vmatprep.subr.mxu0 0.0
        %915 = vmatpush1.msra.mxu0 0.0
        %916 = vmatprep.subr.mxu0 0.0
        %917 = vmatpush1.msra.mxu0 0.0
        %918 = vmatprep.subr.mxu0 0.0
        %919 = vmatpush1.msra.mxu0 0.0
        %920 = vmatprep.subr.mxu0 0.0
        %921 = vmatpush1.msra.mxu0 0.0
        %922 = vmatprep.subr.mxu0 0.0
        %923 = vmatpush1.msra.mxu0 0.0
        %924 = vmatprep.subr.mxu0 0.0
        %925 = vmatpush1.msra.mxu0 0.0
        %926 = vmatprep.subr.mxu0 0.0
        %927 = vmatpush1.msra.mxu0 0.0
        %928 = vmatprep.subr.mxu0 0.0
        %929 = vmatpush1.msra.mxu0 0.0
        %930 = vmatprep.subr.mxu0 0.0
        %931 = vmatpush1.msra.mxu0 0.0
        %932 = vmatprep.subr.mxu0 0.0
        %933 = vmatpush1.msra.mxu0 0.0
        %934 = vmatprep.subr.mxu0 0.0
        %935 = vmatpush1.msra.mxu0 0.0
        %936 = vmatprep.subr.mxu0 0.0
        %937 = vmatpush1.msra.mxu0 0.0
        %938 = vmatprep.subr.mxu0 0.0
        %939 = vmatpush1.msra.mxu0 0.0
        %940 = vmatprep.subr.mxu0 0.0
        %941 = vmatpush1.msra.mxu0 0.0
        %942 = vmatprep.subr.mxu0 0.0
        %943 = vmatpush1.msra.mxu0 0.0
        %944 = vmatprep.subr.mxu0 0.0
        %945 = vmatpush1.msra.mxu0 0.0
        %946 = vmatprep.subr.mxu0 0.0
        %947 = vmatpush1.msra.mxu0 0.0
        %948 = vmatprep.subr.mxu0 0.0
        %949 = vmatpush1.msra.mxu0 0.0
        %950 = vmatprep.subr.mxu0 0.0
        %951 = vmatpush1.msra.mxu0 0.0
        %952 = vmatprep.subr.mxu0 0.0
        %953 = vmatpush1.msra.mxu0 0.0
        %954 = vmatprep.subr.mxu0 0.0
        %955 = vmatpush1.msra.mxu0 0.0
        %956 = vmatprep.subr.mxu0 0.0
        %957 = vmatpush1.msra.mxu0 0.0
        %958 = vmatprep.subr.mxu0 0.0
        %959 = vmatpush1.msra.mxu0 0.0
        %960 = vmatprep.mubr.f32.mxu0 0.0
        %961 = vmatmul.mubr.f32.gmra.mrb[0].mxu0 %v894
        %v962 = vpop.f32.mrb[0].mxu0
        %v963 = vadd.f32 0.0, %v962
        %v964 = vpop.f32.mrb[0].mxu0
        %965 = vdwg.mxu0
        %v966 = vrcp.pop %v963
        %v967 = vmul.f32 %v963, %v966
        %v968 = vsub.f32 2.0, %v967
        %v969 = vmul.f32 %v966, %v968
        %v970 = vmul.f32 %v884, %v969
        %v972 = vsel %vm878, %v970, 0
        %974 = vmatprep.subr.mxu0 0.0
        %975 = vmatpush1.msra.mxu0 %v773
        %976 = vmatprep.subr.mxu0 0.0
        %977 = vmatpush1.msra.mxu0 %v774
        %978 = vmatprep.subr.mxu0 0.0
        %979 = vmatpush1.msra.mxu0 %v775
        %980 = vmatprep.subr.mxu0 0.0
        %981 = vmatpush1.msra.mxu0 %v776
        %982 = vmatprep.subr.mxu0 0.0
        %983 = vmatpush1.msra.mxu0 %v777
        %984 = vmatprep.subr.mxu0 0.0
        %985 = vmatpush1.msra.mxu0 %v778
        %986 = vmatprep.subr.mxu0 0.0
        %987 = vmatpush1.msra.mxu0 %v779
        %988 = vmatprep.subr.mxu0 0.0
        %989 = vmatpush1.msra.mxu0 %v780
        %990 = vmatprep.subr.mxu0 0.0
        %991 = vmatpush1.msra.mxu0 0.0
        %992 = vmatprep.subr.mxu0 0.0
        %993 = vmatpush1.msra.mxu0 0.0
        %994 = vmatprep.subr.mxu0 0.0
        %995 = vmatpush1.msra.mxu0 0.0
        %996 = vmatprep.subr.mxu0 0.0
        %997 = vmatpush1.msra.mxu0 0.0
        %998 = vmatprep.subr.mxu0 0.0
        %999 = vmatpush1.msra.mxu0 0.0
        %1000 = vmatprep.subr.mxu0 0.0
        %1001 = vmatpush1.msra.mxu0 0.0
        %1002 = vmatprep.subr.mxu0 0.0
        %1003 = vmatpush1.msra.mxu0 0.0
        %1004 = vmatprep.subr.mxu0 0.0
        %1005 = vmatpush1.msra.mxu0 0.0
        %1006 = vmatprep.subr.mxu0 0.0
        %1007 = vmatpush1.msra.mxu0 0.0
        %1008 = vmatprep.subr.mxu0 0.0
        %1009 = vmatpush1.msra.mxu0 0.0
        %1010 = vmatprep.subr.mxu0 0.0
        %1011 = vmatpush1.msra.mxu0 0.0
        %1012 = vmatprep.subr.mxu0 0.0
        %1013 = vmatpush1.msra.mxu0 0.0
        %1014 = vmatprep.subr.mxu0 0.0
        %1015 = vmatpush1.msra.mxu0 0.0
        %1016 = vmatprep.subr.mxu0 0.0
        %1017 = vmatpush1.msra.mxu0 0.0
        %1018 = vmatprep.subr.mxu0 0.0
        %1019 = vmatpush1.msra.mxu0 0.0
        %1020 = vmatprep.subr.mxu0 0.0
        %1021 = vmatpush1.msra.mxu0 0.0
        %1022 = vmatprep.subr.mxu0 0.0
        %1023 = vmatpush1.msra.mxu0 0.0
        %1024 = vmatprep.subr.mxu0 0.0
        %1025 = vmatpush1.msra.mxu0 0.0
        %1026 = vmatprep.subr.mxu0 0.0
        %1027 = vmatpush1.msra.mxu0 0.0
        %1028 = vmatprep.subr.mxu0 0.0
        %1029 = vmatpush1.msra.mxu0 0.0
        %1030 = vmatprep.subr.mxu0 0.0
        %1031 = vmatpush1.msra.mxu0 0.0
        %1032 = vmatprep.subr.mxu0 0.0
        %1033 = vmatpush1.msra.mxu0 0.0
        %1034 = vmatprep.subr.mxu0 0.0
        %1035 = vmatpush1.msra.mxu0 0.0
        %1036 = vmatprep.subr.mxu0 0.0
        %1037 = vmatpush1.msra.mxu0 0.0
        %1038 = vmatprep.mubr.f32.mxu0 0.0
        %1039 = vmatmul.mubr.f32.gmra.mrb[0].mxu0 %v972
        %v1040 = vpop.f32.mrb[0].mxu0
        %v1041 = vadd.f32 0.0, %v1040
        %v1042 = vpop.f32.mrb[0].mxu0
        %1043 = vdwg.mxu0
        %v1044 = vld [vmem:[%s6] sm:$0xff]
        %v1045 = vld [vmem:[%s6 + $0x8] sm:$0xff]
        %v1046 = vld [vmem:[%s6 + $0x10] sm:$0xff]
        %v1047 = vld [vmem:[%s6 + $0x18] sm:$0xff]
        %v1048 = vld [vmem:[%s7] sm:$0x1]
        %v1050 = vlaneseq
        %v1051 = vshrl.u32 %v1050, 7
        %v1052 = vsub.s32 0, %v1051
        %v1053 = vrot.slane %v1048, %v1052
        %v1056 = vsel %vm369, %v1041, 0
        %1058 = vmatprep.subr.mxu0 0.0
        %1059 = vmatpush1.msra.mxu0 %v1044
        %1060 = vmatprep.subr.mxu0 0.0
        %1061 = vmatpush1.msra.mxu0 %v1045
        %1062 = vmatprep.subr.mxu0 0.0
        %1063 = vmatpush1.msra.mxu0 %v1046
        %1064 = vmatprep.subr.mxu0 0.0
        %1065 = vmatpush1.msra.mxu0 %v1047
        %1066 = vmatprep.subr.mxu0 0.0
        %1067 = vmatpush1.msra.mxu0 0.0
        %1068 = vmatprep.subr.mxu0 0.0
        %1069 = vmatpush1.msra.mxu0 0.0
        %1070 = vmatprep.subr.mxu0 0.0
        %1071 = vmatpush1.msra.mxu0 0.0
        %1072 = vmatprep.subr.mxu0 0.0
        %1073 = vmatpush1.msra.mxu0 0.0
        %1074 = vmatprep.subr.mxu0 0.0
        %1075 = vmatpush1.msra.mxu0 0.0
        %1076 = vmatprep.subr.mxu0 0.0
        %1077 = vmatpush1.msra.mxu0 0.0
        %1078 = vmatprep.subr.mxu0 0.0
        %1079 = vmatpush1.msra.mxu0 0.0
        %1080 = vmatprep.subr.mxu0 0.0
        %1081 = vmatpush1.msra.mxu0 0.0
        %1082 = vmatprep.subr.mxu0 0.0
        %1083 = vmatpush1.msra.mxu0 0.0
        %1084 = vmatprep.subr.mxu0 0.0
        %1085 = vmatpush1.msra.mxu0 0.0
        %1086 = vmatprep.subr.mxu0 0.0
        %1087 = vmatpush1.msra.mxu0 0.0
        %1088 = vmatprep.subr.mxu0 0.0
        %1089 = vmatpush1.msra.mxu0 0.0
        %1090 = vmatprep.subr.mxu0 0.0
        %1091 = vmatpush1.msra.mxu0 0.0
        %1092 = vmatprep.subr.mxu0 0.0
        %1093 = vmatpush1.msra.mxu0 0.0
        %1094 = vmatprep.subr.mxu0 0.0
        %1095 = vmatpush1.msra.mxu0 0.0
        %1096 = vmatprep.subr.mxu0 0.0
        %1097 = vmatpush1.msra.mxu0 0.0
        %1098 = vmatprep.subr.mxu0 0.0
        %1099 = vmatpush1.msra.mxu0 0.0
        %1100 = vmatprep.subr.mxu0 0.0
        %1101 = vmatpush1.msra.mxu0 0.0
        %1102 = vmatprep.subr.mxu0 0.0
        %1103 = vmatpush1.msra.mxu0 0.0
        %1104 = vmatprep.subr.mxu0 0.0
        %1105 = vmatpush1.msra.mxu0 0.0
        %1106 = vmatprep.subr.mxu0 0.0
        %1107 = vmatpush1.msra.mxu0 0.0
        %1108 = vmatprep.subr.mxu0 0.0
        %1109 = vmatpush1.msra.mxu0 0.0
        %1110 = vmatprep.subr.mxu0 0.0
        %1111 = vmatpush1.msra.mxu0 0.0
        %1112 = vmatprep.subr.mxu0 0.0
        %1113 = vmatpush1.msra.mxu0 0.0
        %1114 = vmatprep.subr.mxu0 0.0
        %1115 = vmatpush1.msra.mxu0 0.0
        %1116 = vmatprep.subr.mxu0 0.0
        %1117 = vmatpush1.msra.mxu0 0.0
        %1118 = vmatprep.subr.mxu0 0.0
        %1119 = vmatpush1.msra.mxu0 0.0
        %1120 = vmatprep.subr.mxu0 0.0
        %1121 = vmatpush1.msra.mxu0 0.0
        %1122 = vmatprep.mubr.f32.mxu0 0.0
        %1123 = vmatmul.mubr.f32.gmra.mrb[0].mxu0 %v1056
        %v1124 = vpop.f32.mrb[0].mxu0
        %v1125 = vadd.f32 %v1053, %v1124
        %v1126 = vpop.f32.mrb[0].mxu0
        %1127 = vdwg.mxu0
        %1128 = vmatprep.subr.mxu0 0.0
        %1129 = vmatpush1.msra.mxu0 %v514
        %1130 = vmatprep.subr.mxu0 0.0
        %1131 = vmatpush1.msra.mxu0 %v515
        %1132 = vmatprep.subr.mxu0 0.0
        %1133 = vmatpush1.msra.mxu0 %v516
        %1134 = vmatprep.subr.mxu0 0.0
        %1135 = vmatpush1.msra.mxu0 %v517
        %1136 = vmatprep.subr.mxu0 0.0
        %1137 = vmatpush1.msra.mxu0 %v518
        %1138 = vmatprep.subr.mxu0 0.0
        %1139 = vmatpush1.msra.mxu0 %v519
        %1140 = vmatprep.subr.mxu0 0.0
        %1141 = vmatpush1.msra.mxu0 %v520
        %1142 = vmatprep.subr.mxu0 0.0
        %1143 = vmatpush1.msra.mxu0 %v521
        %1144 = vmatprep.subr.mxu0 0.0
        %1145 = vmatpush1.msra.mxu0 0.0
        %1146 = vmatprep.subr.mxu0 0.0
        %1147 = vmatpush1.msra.mxu0 0.0
        %1148 = vmatprep.subr.mxu0 0.0
        %1149 = vmatpush1.msra.mxu0 0.0
        %1150 = vmatprep.subr.mxu0 0.0
        %1151 = vmatpush1.msra.mxu0 0.0
        %1152 = vmatprep.subr.mxu0 0.0
        %1153 = vmatpush1.msra.mxu0 0.0
        %1154 = vmatprep.subr.mxu0 0.0
        %1155 = vmatpush1.msra.mxu0 0.0
        %1156 = vmatprep.subr.mxu0 0.0
        %1157 = vmatpush1.msra.mxu0 0.0
        %1158 = vmatprep.subr.mxu0 0.0
        %1159 = vmatpush1.msra.mxu0 0.0
        %1160 = vmatprep.subr.mxu0 0.0
        %1161 = vmatpush1.msra.mxu0 0.0
        %1162 = vmatprep.subr.mxu0 0.0
        %1163 = vmatpush1.msra.mxu0 0.0
        %1164 = vmatprep.subr.mxu0 0.0
        %1165 = vmatpush1.msra.mxu0 0.0
        %1166 = vmatprep.subr.mxu0 0.0
        %1167 = vmatpush1.msra.mxu0 0.0
        %1168 = vmatprep.subr.mxu0 0.0
        %1169 = vmatpush1.msra.mxu0 0.0
        %1170 = vmatprep.subr.mxu0 0.0
        %1171 = vmatpush1.msra.mxu0 0.0
        %1172 = vmatprep.subr.mxu0 0.0
        %1173 = vmatpush1.msra.mxu0 0.0
        %1174 = vmatprep.subr.mxu0 0.0
        %1175 = vmatpush1.msra.mxu0 0.0
        %1176 = vmatprep.subr.mxu0 0.0
        %1177 = vmatpush1.msra.mxu0 0.0
        %1178 = vmatprep.subr.mxu0 0.0
        %1179 = vmatpush1.msra.mxu0 0.0
        %1180 = vmatprep.subr.mxu0 0.0
        %1181 = vmatpush1.msra.mxu0 0.0
        %1182 = vmatprep.subr.mxu0 0.0
        %1183 = vmatpush1.msra.mxu0 0.0
        %1184 = vmatprep.subr.mxu0 0.0
        %1185 = vmatpush1.msra.mxu0 0.0
        %1186 = vmatprep.subr.mxu0 0.0
        %1187 = vmatpush1.msra.mxu0 0.0
        %1188 = vmatprep.subr.mxu0 0.0
        %1189 = vmatpush1.msra.mxu0 0.0
        %1190 = vmatprep.subr.mxu0 0.0
        %1191 = vmatpush1.msra.mxu0 0.0
        %1192 = vmatprep.mubr.f32.mxu0 0.0
        %1193 = vmatmul.mubr.f32.gmra.mrb[0].mxu0 %v972
        %v1194 = vpop.f32.mrb[0].mxu0
        %v1195 = vadd.f32 0.0, %v1194
        %v1196 = vpop.f32.mrb[0].mxu0
        %1197 = vdwg.mxu0
        %v1198 = vmul.f32 %v1195, 0.125
        %1199 = vst.msk [vmem:[%s327] sm:$0xff] %vm369, %v1125
        %1200 = vst.msk [vmem:[%s334] sm:$0xff] %vm530, %v1198
        %s1201 = sand.u32 %s208, 1
        %s1202 = scalar_lea.sflag [#allocation3], %s1201
        %s1203 = sand.u32 %s208, 1
        %s1204 = smul.addr %s1203, 8
        %s1205 = scalar_lea.vmem [#allocation2], %s1204
        %s1206 = sand.u32 %s234, 1
        %s1207 = scalar_lea.sflag [#allocation5], %s1206
        %s1208 = sand.u32 %s234, 1
        %s1209 = smul.addr %s1208, 8
        %s1210 = scalar_lea.vmem [#allocation4], %s1209
        // Predicated region
        $region53: #{attention_layer_forward.1} parent=51 // pred_check
          %p1211 = pneg %p218
        $region54: #{attention_layer_forward.1} parent=51 // pred_check_branch
          %1213 = sbr.rel (%p1211) target = $region56
        $region55: #{attention_layer_forward.1} parent=51 // pred_region
          %s1215 = ssub.s32 128, 128
          %1216 = vsyncadd %s1202, %s1215
          %s1217 = smul.addr %s27, 128
          %s1218 = scalar_lea.hbm %s8, %s1217
          %s1220 = sshll.u32 %s1205, 4
          %s1221 = int_to_ptr.vmem [resolvable:$true] %s1220
          %1223 = dma.vmem_to_hbm [thread:$0]  %s1221, 128, %s1218, %s1202
        $region56: #{attention_layer_forward.1} parent=51 // pred_fallthru
          _
        // Predicated region
        $region57: #{attention_layer_forward.1} parent=51 // pred_check
          %p1224 = pneg %p244
        $region58: #{attention_layer_forward.1} parent=51 // pred_check_branch
          %1226 = sbr.rel (%p1224) target = $region60
        $region59: #{attention_layer_forward.1} parent=51 // pred_region
          %s1228 = ssub.s32 128, 128
          %1229 = vsyncadd %s1207, %s1228
          %s1230 = smul.addr %s27, 128
          %s1231 = scalar_lea.hbm %s9, %s1230
          %s1233 = sshll.u32 %s1210, 4
          %s1234 = int_to_ptr.vmem [resolvable:$true] %s1233
          %1236 = dma.vmem_to_hbm [thread:$0]  %s1234, 128, %s1231, %s1207
        $region60: #{attention_layer_forward.1} parent=51 // pred_fallthru
          _
      $region52: #{attention_layer_forward.1} parent=5 // pred_fallthru
        _
      %p1237 = scmp.le.s32.totalorder 2, %s22
      // Predicated region
      $region61: #{attention_layer_forward.1} parent=5 // pred_check
        %p1238 = pneg %p1237
      $region62: #{attention_layer_forward.1} parent=5 // pred_check_branch
        %1240 = sbr.rel (%p1238) target = $region64
      $region63: #{attention_layer_forward.1} parent=5 // pred_region
        %s1241 = ssub.s32 %s22, 2
        // Predicated region
        $region65: #{attention_layer_forward.1} parent=63 // pred_check
          %p1242 = pneg %p224
        $region66: #{attention_layer_forward.1} parent=63 // pred_check_branch
          %1244 = sbr.rel (%p1242) target = $region68
        $region67: #{attention_layer_forward.1} parent=63 // pred_region
          %s1245 = sand.u32 %s209, 1
          %s1246 = scalar_lea.sflag [#allocation3], %s1245
          %s1247 = sand.u32 %s209, 1
          %s1248 = smul.addr %s1247, 8
          %s1249 = scalar_lea.vmem [#allocation2], %s1248
          %1250 = dma.done %s1246, 128
        $region68: #{attention_layer_forward.1} parent=63 // pred_fallthru
          _
        // Predicated region
        $region69: #{attention_layer_forward.1} parent=63 // pred_check
          %p1251 = pneg %p250
        $region70: #{attention_layer_forward.1} parent=63 // pred_check_branch
          %1253 = sbr.rel (%p1251) target = $region72
        $region71: #{attention_layer_forward.1} parent=63 // pred_region
          %s1254 = sand.u32 %s235, 1
          %s1255 = scalar_lea.sflag [#allocation5], %s1254
          %s1256 = sand.u32 %s235, 1
          %s1257 = smul.addr %s1256, 8
          %s1258 = scalar_lea.vmem [#allocation4], %s1257
          %1259 = dma.done %s1255, 128
        $region72: #{attention_layer_forward.1} parent=63 // pred_fallthru
          _
      $region64: #{attention_layer_forward.1} parent=5 // pred_fallthru
        _
    $region6: #{attention_layer_forward.1} parent=1 // loop_footer
      %s26 = sadd.s32 1, %s22
    $region7: #{attention_layer_forward.1} parent=1 // loop_footer_branch
      %21 = sbr.rel target = $region3
    $region8: #{attention_layer_forward.1} parent=1 // loop_exit
      _
    %1260 = vsyncpa [#allocation3], 1
    %s1261 = scalar_lea.sflag [#allocation3], 1
    %1262 = vsyncpa %s1261, 1
    %1263 = vsyncpa [#allocation5], 1
    %s1264 = scalar_lea.sflag [#allocation5], 1
    %1265 = vsyncpa %s1264, 1

</llo_original>
